<compile_context>
chip_gen: v5e
topology: v5e:2x2
jax: 0.10.0
libtpu: 0.0.40
codegen_flags: <defaults>
</compile_context>

<pallas_src>
import functools

import jax
import jax.numpy as jnp
from jax.experimental import pallas as pl
from jax.experimental.pallas import tpu as pltpu


def _round_up(x, m):
    return ((x + m - 1) // m) * m


# -----------------------------------------------------------------------------
# Kernel 1: projection  g0 = feat @ W   (W is shared across hops -> do it once)
# -----------------------------------------------------------------------------
def _project_kernel(feat_ref, w_ref, g_ref, s_ref):
    acc = jnp.dot(feat_ref[...], w_ref[...], preferred_element_type=jnp.float32)
    g_ref[...] = acc.astype(g_ref.dtype)   # compute-dtype copy fed to hop matmuls
    s_ref[...] = acc                       # f32 running sum of hop terms


# -----------------------------------------------------------------------------
# Kernel 2: one propagation hop
#   g_next = A_hat @ g_prev          (tiled over (dst rows, src cols))
#   s_next = s_prev + g_next         (+ hoisted bias and ReLU on the last hop)
# -----------------------------------------------------------------------------
def _hop_kernel(a_ref, g_prev_ref, s_prev_ref, b_ref,
                g_next_ref, s_next_ref, acc_ref, *, is_last_hop):
    j = pl.program_id(1)

    @pl.when(j == 0)
    def _():
        acc_ref[...] = jnp.zeros_like(acc_ref)

    acc_ref[...] += jnp.dot(a_ref[...], g_prev_ref[...],
                            preferred_element_type=jnp.float32)

    @pl.when(j == pl.num_programs(1) - 1)
    def _():
        acc = acc_ref[...]
        g_next_ref[...] = acc.astype(g_next_ref.dtype)
        s = s_prev_ref[...] + acc
        if is_last_hop:
            # b_ref already holds (k_hops + 1) * bias (hoisted out of the loop).
            s = jnp.maximum(s + b_ref[...], 0.0)
        s_next_ref[...] = s


# -----------------------------------------------------------------------------
# Kernel 3: epilogue for the degenerate k_hops == 0 case (relu(s + (k+1)*b)).
# -----------------------------------------------------------------------------
def _epilogue_kernel(s_ref, b_ref, out_ref):
    out_ref[...] = jnp.maximum(s_ref[...] + b_ref[...], 0.0)


def conv_layer_forward(adj, feat, out_degrees, w0, b0, *, k=2,
                       compute_dtype=jnp.bfloat16):
    """ConvLayer forward (method='sum', bias=True, activation='relu').

    adj[d, s] = 1 iff there is an edge s -> d, so DGL's
    update_all(copy_u, sum) == adj @ feat. `k` is the constructor argument
    (self.k = k + 1 terms, i.e. `k` propagation hops).
    """
    n, fin = feat.shape
    fout = w0.shape[1]
    k_hops = int(k)

    # --- fold the degree normalization into the adjacency (done once) --------
    norm = jnp.power(jnp.clip(out_degrees.astype(jnp.float32), 1.0, None), -0.5)
    a_hat = (norm[:, None] * adj.astype(jnp.float32)) * norm[None, :]

    # --- padding / tile selection --------------------------------------------
    fout_p = _round_up(fout, 128)            # lane-dense output stores
    if n <= 256:
        n_p = _round_up(n, 8)
        tm = tk = n_p                        # single tile, trivial grid
    else:
        tm = 256                             # MXU-sized tiles (v6e/v7x: 2x256x256)
        tk = 512 if n > 512 else 256
        n_p = _round_up(n, tk)               # tm divides tk, so rows align too

    a_hat = jnp.pad(a_hat, ((0, n_p - n), (0, n_p - n))).astype(compute_dtype)
    feat_p = jnp.pad(feat.astype(compute_dtype), ((0, n_p - n), (0, 0)))
    w_p = jnp.pad(w0.astype(compute_dtype), ((0, 0), (0, fout_p - fout)))
    # bias hoisted out of the hop loop: (k_hops + 1) * b added once at the end.
    b_p = jnp.pad((k_hops + 1) * b0.astype(jnp.float32),
                  (0, fout_p - fout)).reshape(1, fout_p)

    grid_rows = n_p // tm
    grid_src = n_p // tk

    row_spec = pl.BlockSpec((tm, fout_p), lambda i: (i, 0))

    # --- projection: g0 = feat @ W -------------------------------------------
    # TODO(synk): very large in_feats would additionally need a reduction grid
    # axis here; typical GNN feature widths fit a single contraction block.
    g, s = pl.pallas_call(
        _project_kernel,
        grid=(grid_rows,),
        in_specs=[
            pl.BlockSpec((tm, fin), lambda i: (i, 0)),
            pl.BlockSpec((fin, fout_p), lambda i: (0, 0)),
        ],
        out_specs=(row_spec, row_spec),
        out_shape=(
            jax.ShapeDtypeStruct((n_p, fout_p), compute_dtype),
            jax.ShapeDtypeStruct((n_p, fout_p), jnp.float32),
        ),
        compiler_params=pltpu.CompilerParams(
            dimension_semantics=("parallel",)),
    )(feat_p, w_p)

    if k_hops == 0:
        rst = pl.pallas_call(
            _epilogue_kernel,
            grid=(grid_rows,),
            in_specs=[row_spec, pl.BlockSpec((1, fout_p), lambda i: (0, 0))],
            out_specs=row_spec,
            out_shape=jax.ShapeDtypeStruct((n_p, fout_p), jnp.float32),
            compiler_params=pltpu.CompilerParams(
                dimension_semantics=("parallel",)),
        )(s, b_p)
        return rst[:n, :fout]

    # --- propagation hops:  g <- A_hat @ g ;  s <- s + g ---------------------
    item = a_hat.dtype.itemsize
    hop_cost = pl.CostEstimate(
        flops=2 * n_p * n_p * fout_p,
        transcendentals=0,
        bytes_accessed=(n_p * n_p * item                # A_hat
                        + 2 * n_p * fout_p * item       # g in / g out
                        + 2 * n_p * fout_p * 4          # s in / s out
                        + fout_p * 4),                  # bias
    )
    hop_specs = dict(
        grid=(grid_rows, grid_src),
        in_specs=[
            pl.BlockSpec((tm, tk), lambda i, j: (i, j)),          # A_hat tile
            pl.BlockSpec((tk, fout_p), lambda i, j: (j, 0)),      # g_prev block
            pl.BlockSpec((tm, fout_p), lambda i, j: (i, 0)),      # s_prev block
            pl.BlockSpec((1, fout_p), lambda i, j: (0, 0)),       # bias
        ],
        out_specs=(
            pl.BlockSpec((tm, fout_p), lambda i, j: (i, 0)),      # g_next
            pl.BlockSpec((tm, fout_p), lambda i, j: (i, 0)),      # s_next
        ),
        out_shape=(
            jax.ShapeDtypeStruct((n_p, fout_p), compute_dtype),
            jax.ShapeDtypeStruct((n_p, fout_p), jnp.float32),
        ),
        scratch_shapes=[pltpu.VMEM((tm, fout_p), jnp.float32)],
        compiler_params=pltpu.CompilerParams(
            dimension_semantics=("parallel", "arbitrary")),
        cost_estimate=hop_cost,
    )
    hop_mid = pl.pallas_call(
        functools.partial(_hop_kernel, is_last_hop=False), **hop_specs)
    hop_last = pl.pallas_call(
        functools.partial(_hop_kernel, is_last_hop=True), **hop_specs)

    for hop in range(k_hops):
        call = hop_last if hop == k_hops - 1 else hop_mid
        g, s = call(a_hat, g, s, b_p)

    return s[:n, :fout]


def _reference(adj, feat, out_degrees, w0, b0, *, k=2):
    """Pure-JAX f32 reference mirroring the PyTorch forward exactly."""
    norm = jnp.power(jnp.clip(out_degrees.astype(jnp.float32), 1.0, None), -0.5)
    norm = norm.reshape(-1, 1)
    rst = feat @ w0 + b0
    f = feat
    for _ in range(k):
        f = f * norm
        f = adj @ f
        f = f * norm
        rst = rst + f @ w0 + b0
    return jnp.maximum(rst, 0.0)


def _make_inputs(key, n, fin, fout):
    k_edges, k_feat, k_w, k_b = jax.random.split(key, 4)
    adj = jax.random.bernoulli(k_edges, p=0.4, shape=(n, n)).astype(jnp.float32)
    out_degrees = jnp.sum(adj, axis=0)          # out-degree of each source node
    feat = jax.random.normal(k_feat, (n, fin), dtype=jnp.float32)
    bound = (6.0 / (fin + fout)) ** 0.5         # xavier_uniform like the module
    w0 = jax.random.uniform(k_w, (fin, fout), jnp.float32, -bound, bound)
    # (reset_parameters zeroes biases; use a small nonzero bias so the bias
    #  path is actually exercised by the test.)
    b0 = 0.1 * jax.random.normal(k_b, (fout,), dtype=jnp.float32)
    return adj, feat, out_degrees, w0, b0


if __name__ == "__main__":
    key = jax.random.PRNGKey(0)
    key1, key2 = jax.random.split(key)
    K = 2  # constructor k -> self.k = 3 terms total

    # --- config 1: tiny graph, single-tile path; f32 (tight) and bf16 paths --
    adj, feat, degs, w0, b0 = _make_inputs(key1, n=8, fin=32, fout=16)
    ref = _reference(adj, feat, degs, w0, b0, k=K)

    fwd_f32 = jax.jit(functools.partial(conv_layer_forward, k=K,
                                        compute_dtype=jnp.float32))
    out_f32 = jax.block_until_ready(fwd_f32(adj, feat, degs, w0, b0))
    assert out_f32.shape == ref.shape
    assert jnp.allclose(out_f32, ref, atol=1e-4, rtol=1e-4), "f32 mismatch"

    fwd_bf16 = jax.jit(functools.partial(conv_layer_forward, k=K,
                                         compute_dtype=jnp.bfloat16))
    out_bf16 = jax.block_until_ready(fwd_bf16(adj, feat, degs, w0, b0))
    # bf16 MXU operands with f32 accumulation: loose tolerance vs f32 reference.
    assert jnp.allclose(out_bf16, ref, atol=5e-2, rtol=5e-2), "bf16 mismatch"

    # --- config 2: non-aligned N exercising the tiled (2x2) grid path --------
    adj2, feat2, degs2, w02, b02 = _make_inputs(key2, n=300, fin=48, fout=24)
    ref2 = _reference(adj2, feat2, degs2, w02, b02, k=K)
    fwd2 = jax.jit(functools.partial(conv_layer_forward, k=K,
                                     compute_dtype=jnp.float32))
    out2 = jax.block_until_ready(fwd2(adj2, feat2, degs2, w02, b02))
    assert out2.shape == ref2.shape
    assert jnp.allclose(out2, ref2, atol=1e-3, rtol=1e-3), "tiled-path mismatch"

    print("KERNEL_OK")
</pallas_src>

<mosaic_0001>
module attributes {stable_mosaic.version = 11 : i64} {
  func.func @_hop_kernel(%arg0: i32, %arg1: i32, %arg2: memref<8x8xf32, #tpu.memory_space<vmem>>, %arg3: memref<8x128xf32, #tpu.memory_space<vmem>>, %arg4: memref<8x128xf32, #tpu.memory_space<vmem>>, %arg5: memref<1x128xf32, #tpu.memory_space<vmem>>, %arg6: memref<8x128xf32, #tpu.memory_space<vmem>>, %arg7: memref<8x128xf32, #tpu.memory_space<vmem>>, %arg8: memref<8x128xf32, #tpu.memory_space<vmem>>) attributes {dimension_semantics = [#tpu.dimension_semantics<parallel>, #tpu.dimension_semantics<arbitrary>], iteration_bounds = array<i64: 1, 1>, scalar_prefetch = 0 : i64, scratch_operands = 1 : i64, tpu.core_type = #tpu.core_type<tc>, window_params = [{transform_indices = @transform_0, window_bounds = array<i64: 8, 8>}, {transform_indices = @transform_1, window_bounds = array<i64: 8, 128>}, {transform_indices = @transform_2, window_bounds = array<i64: 8, 128>}, {pipeline_mode = #tpu.pipeline_mode<synchronous>, transform_indices = @transform_3, window_bounds = array<i64: 1, 128>}, {transform_indices = @transform_4, window_bounds = array<i64: 8, 128>}, {transform_indices = @transform_5, window_bounds = array<i64: 8, 128>}]} {
    %c0_i32 = arith.constant 0 : i32
    %0 = arith.cmpi eq, %arg1, %c0_i32 : i32
    %1 = arith.extui %0 : i1 to i32
    %c0_i32_0 = arith.constant 0 : i32
    %2 = arith.cmpi ne, %1, %c0_i32_0 : i32
    scf.if %2 {
      %cst_10 = arith.constant 0.000000e+00 : f32
      %12 = vector.broadcast %cst_10 : f32 to vector<8x128xf32>
      %c0_11 = arith.constant 0 : index
      %c0_12 = arith.constant 0 : index
      %13 = vector.load %arg8[%c0_11, %c0_12] : memref<8x128xf32, #tpu.memory_space<vmem>>, vector<8x128xf32>
      tpu.vector_store %arg8[%c0_11, %c0_12], %12 {strides = array<i32>} : memref<8x128xf32, #tpu.memory_space<vmem>>, vector<8x128xf32>,
    } else {
    }
    %c0 = arith.constant 0 : index
    %c0_1 = arith.constant 0 : index
    %3 = vector.load %arg8[%c0, %c0_1] : memref<8x128xf32, #tpu.memory_space<vmem>>, vector<8x128xf32>
    %c0_2 = arith.constant 0 : index
    %c0_3 = arith.constant 0 : index
    %4 = vector.load %arg2[%c0_2, %c0_3] : memref<8x8xf32, #tpu.memory_space<vmem>>, vector<8x8xf32>
    %c0_4 = arith.constant 0 : index
    %c0_5 = arith.constant 0 : index
    %5 = vector.load %arg3[%c0_4, %c0_5] : memref<8x128xf32, #tpu.memory_space<vmem>>, vector<8x128xf32>
    %cst = arith.constant dense<0.000000e+00> : vector<8x128xf32>
    %6 = tpu.matmul %4, %5, %cst {dimension_numbers = #tpu.dot_dimension_numbers<[1], [0], [0], [1], [0, 0, 1, 1], [], []>} : vector<8x8xf32>, vector<8x128xf32>, vector<8x128xf32> -> vector<8x128xf32>
    %7 = arith.addf %3, %6 : vector<8x128xf32>
    %c0_6 = arith.constant 0 : index
    %c0_7 = arith.constant 0 : index
    %8 = vector.load %arg8[%c0_6, %c0_7] : memref<8x128xf32, #tpu.memory_space<vmem>>, vector<8x128xf32>
    tpu.vector_store %arg8[%c0_6, %c0_7], %7 {strides = array<i32>} : memref<8x128xf32, #tpu.memory_space<vmem>>, vector<8x128xf32>,
    %c0_i32_8 = arith.constant 0 : i32
    %9 = arith.cmpi eq, %arg1, %c0_i32_8 : i32
    %10 = arith.extui %9 : i1 to i32
    %c0_i32_9 = arith.constant 0 : i32
    %11 = arith.cmpi ne, %10, %c0_i32_9 : i32
    scf.if %11 {
      %c0_10 = arith.constant 0 : index
      %c0_11 = arith.constant 0 : index
      %12 = vector.load %arg8[%c0_10, %c0_11] : memref<8x128xf32, #tpu.memory_space<vmem>>, vector<8x128xf32>
      %c0_12 = arith.constant 0 : index
      %c0_13 = arith.constant 0 : index
      %13 = vector.load %arg6[%c0_12, %c0_13] : memref<8x128xf32, #tpu.memory_space<vmem>>, vector<8x128xf32>
      tpu.vector_store %arg6[%c0_12, %c0_13], %12 {strides = array<i32>} : memref<8x128xf32, #tpu.memory_space<vmem>>, vector<8x128xf32>,
      %c0_14 = arith.constant 0 : index
      %c0_15 = arith.constant 0 : index
      %14 = vector.load %arg4[%c0_14, %c0_15] : memref<8x128xf32, #tpu.memory_space<vmem>>, vector<8x128xf32>
      %15 = arith.addf %14, %12 : vector<8x128xf32>
      %c0_16 = arith.constant 0 : index
      %c0_17 = arith.constant 0 : index
      %16 = vector.load %arg7[%c0_16, %c0_17] : memref<8x128xf32, #tpu.memory_space<vmem>>, vector<8x128xf32>
      tpu.vector_store %arg7[%c0_16, %c0_17], %15 {strides = array<i32>} : memref<8x128xf32, #tpu.memory_space<vmem>>, vector<8x128xf32>,
    } else {
    }
    return
  }
  func.func @transform_0(%arg0: i32, %arg1: i32) -> (i32, i32) {
    %c0_i32 = arith.constant 0 : i32
    return %arg0, %arg1 : i32, i32
  }
  func.func @transform_1(%arg0: i32, %arg1: i32) -> (i32, i32) {
    %c0_i32 = arith.constant 0 : i32
    %c0_i32_0 = arith.constant 0 : i32
    return %arg1, %c0_i32 : i32, i32
  }
  func.func @transform_2(%arg0: i32, %arg1: i32) -> (i32, i32) {
    %c0_i32 = arith.constant 0 : i32
    %c0_i32_0 = arith.constant 0 : i32
    return %arg0, %c0_i32 : i32, i32
  }
  func.func @transform_3(%arg0: i32, %arg1: i32) -> (i32, i32) {
    %c0_i32 = arith.constant 0 : i32
    %c0_i32_0 = arith.constant 0 : i32
    %c0_i32_1 = arith.constant 0 : i32
    return %c0_i32, %c0_i32_0 : i32, i32
  }
  func.func @transform_4(%arg0: i32, %arg1: i32) -> (i32, i32) {
    %c0_i32 = arith.constant 0 : i32
    %c0_i32_0 = arith.constant 0 : i32
    return %arg0, %c0_i32 : i32, i32
  }
  func.func @transform_5(%arg0: i32, %arg1: i32) -> (i32, i32) {
    %c0_i32 = arith.constant 0 : i32
    %c0_i32_0 = arith.constant 0 : i32
    return %arg0, %c0_i32 : i32, i32
  }
}

module attributes {stable_mosaic.version = 11 : i64} {
  func.func @_project_kernel(%arg0: i32, %arg1: memref<8x32xf32, #tpu.memory_space<vmem>>, %arg2: memref<32x128xf32, #tpu.memory_space<vmem>>, %arg3: memref<8x128xf32, #tpu.memory_space<vmem>>, %arg4: memref<8x128xf32, #tpu.memory_space<vmem>>) attributes {dimension_semantics = [#tpu.dimension_semantics<parallel>], iteration_bounds = array<i64: 1>, scalar_prefetch = 0 : i64, scratch_operands = 0 : i64, tpu.core_type = #tpu.core_type<tc>, window_params = [{transform_indices = @transform_0, window_bounds = array<i64: 8, 32>}, {pipeline_mode = #tpu.pipeline_mode<synchronous>, transform_indices = @transform_1, window_bounds = array<i64: 32, 128>}, {transform_indices = @transform_2, window_bounds = array<i64: 8, 128>}, {transform_indices = @transform_3, window_bounds = array<i64: 8, 128>}]} {
    %c0 = arith.constant 0 : index
    %c0_0 = arith.constant 0 : index
    %0 = vector.load %arg1[%c0, %c0_0] : memref<8x32xf32, #tpu.memory_space<vmem>>, vector<8x32xf32>
    %c0_1 = arith.constant 0 : index
    %c0_2 = arith.constant 0 : index
    %1 = vector.load %arg2[%c0_1, %c0_2] : memref<32x128xf32, #tpu.memory_space<vmem>>, vector<32x128xf32>
    %cst = arith.constant dense<0.000000e+00> : vector<8x128xf32>
    %2 = tpu.matmul %0, %1, %cst {dimension_numbers = #tpu.dot_dimension_numbers<[1], [0], [0], [1], [0, 0, 1, 1], [], []>} : vector<8x32xf32>, vector<32x128xf32>, vector<8x128xf32> -> vector<8x128xf32>
    %c0_3 = arith.constant 0 : index
    %c0_4 = arith.constant 0 : index
    %3 = vector.load %arg3[%c0_3, %c0_4] : memref<8x128xf32, #tpu.memory_space<vmem>>, vector<8x128xf32>
    tpu.vector_store %arg3[%c0_3, %c0_4], %2 {strides = array<i32>} : memref<8x128xf32, #tpu.memory_space<vmem>>, vector<8x128xf32>,
    %c0_5 = arith.constant 0 : index
    %c0_6 = arith.constant 0 : index
    %4 = vector.load %arg4[%c0_5, %c0_6] : memref<8x128xf32, #tpu.memory_space<vmem>>, vector<8x128xf32>
    tpu.vector_store %arg4[%c0_5, %c0_6], %2 {strides = array<i32>} : memref<8x128xf32, #tpu.memory_space<vmem>>, vector<8x128xf32>,
    return
  }
  func.func @transform_0(%arg0: i32) -> (i32, i32) {
    %c0_i32 = arith.constant 0 : i32
    %c0_i32_0 = arith.constant 0 : i32
    return %arg0, %c0_i32 : i32, i32
  }
  func.func @transform_1(%arg0: i32) -> (i32, i32) {
    %c0_i32 = arith.constant 0 : i32
    %c0_i32_0 = arith.constant 0 : i32
    %c0_i32_1 = arith.constant 0 : i32
    return %c0_i32, %c0_i32_0 : i32, i32
  }
  func.func @transform_2(%arg0: i32) -> (i32, i32) {
    %c0_i32 = arith.constant 0 : i32
    %c0_i32_0 = arith.constant 0 : i32
    return %arg0, %c0_i32 : i32, i32
  }
  func.func @transform_3(%arg0: i32) -> (i32, i32) {
    %c0_i32 = arith.constant 0 : i32
    %c0_i32_0 = arith.constant 0 : i32
    return %arg0, %c0_i32 : i32, i32
  }
}

module attributes {stable_mosaic.version = 11 : i64} {
  func.func @_hop_kernel(%arg0: i32, %arg1: i32, %arg2: memref<8x8xf32, #tpu.memory_space<vmem>>, %arg3: memref<8x128xf32, #tpu.memory_space<vmem>>, %arg4: memref<8x128xf32, #tpu.memory_space<vmem>>, %arg5: memref<1x128xf32, #tpu.memory_space<vmem>>, %arg6: memref<8x128xf32, #tpu.memory_space<vmem>>, %arg7: memref<8x128xf32, #tpu.memory_space<vmem>>, %arg8: memref<8x128xf32, #tpu.memory_space<vmem>>) attributes {dimension_semantics = [#tpu.dimension_semantics<parallel>, #tpu.dimension_semantics<arbitrary>], iteration_bounds = array<i64: 1, 1>, scalar_prefetch = 0 : i64, scratch_operands = 1 : i64, tpu.core_type = #tpu.core_type<tc>, window_params = [{transform_indices = @transform_0, window_bounds = array<i64: 8, 8>}, {transform_indices = @transform_1, window_bounds = array<i64: 8, 128>}, {transform_indices = @transform_2, window_bounds = array<i64: 8, 128>}, {pipeline_mode = #tpu.pipeline_mode<synchronous>, transform_indices = @transform_3, window_bounds = array<i64: 1, 128>}, {transform_indices = @transform_4, window_bounds = array<i64: 8, 128>}, {transform_indices = @transform_5, window_bounds = array<i64: 8, 128>}]} {
    %c0_i32 = arith.constant 0 : i32
    %0 = arith.cmpi eq, %arg1, %c0_i32 : i32
    %1 = arith.extui %0 : i1 to i32
    %c0_i32_0 = arith.constant 0 : i32
    %2 = arith.cmpi ne, %1, %c0_i32_0 : i32
    scf.if %2 {
      %cst_10 = arith.constant 0.000000e+00 : f32
      %12 = vector.broadcast %cst_10 : f32 to vector<8x128xf32>
      %c0_11 = arith.constant 0 : index
      %c0_12 = arith.constant 0 : index
      %13 = vector.load %arg8[%c0_11, %c0_12] : memref<8x128xf32, #tpu.memory_space<vmem>>, vector<8x128xf32>
      tpu.vector_store %arg8[%c0_11, %c0_12], %12 {strides = array<i32>} : memref<8x128xf32, #tpu.memory_space<vmem>>, vector<8x128xf32>,
    } else {
    }
    %c0 = arith.constant 0 : index
    %c0_1 = arith.constant 0 : index
    %3 = vector.load %arg8[%c0, %c0_1] : memref<8x128xf32, #tpu.memory_space<vmem>>, vector<8x128xf32>
    %c0_2 = arith.constant 0 : index
    %c0_3 = arith.constant 0 : index
    %4 = vector.load %arg2[%c0_2, %c0_3] : memref<8x8xf32, #tpu.memory_space<vmem>>, vector<8x8xf32>
    %c0_4 = arith.constant 0 : index
    %c0_5 = arith.constant 0 : index
    %5 = vector.load %arg3[%c0_4, %c0_5] : memref<8x128xf32, #tpu.memory_space<vmem>>, vector<8x128xf32>
    %cst = arith.constant dense<0.000000e+00> : vector<8x128xf32>
    %6 = tpu.matmul %4, %5, %cst {dimension_numbers = #tpu.dot_dimension_numbers<[1], [0], [0], [1], [0, 0, 1, 1], [], []>} : vector<8x8xf32>, vector<8x128xf32>, vector<8x128xf32> -> vector<8x128xf32>
    %7 = arith.addf %3, %6 : vector<8x128xf32>
    %c0_6 = arith.constant 0 : index
    %c0_7 = arith.constant 0 : index
    %8 = vector.load %arg8[%c0_6, %c0_7] : memref<8x128xf32, #tpu.memory_space<vmem>>, vector<8x128xf32>
    tpu.vector_store %arg8[%c0_6, %c0_7], %7 {strides = array<i32>} : memref<8x128xf32, #tpu.memory_space<vmem>>, vector<8x128xf32>,
    %c0_i32_8 = arith.constant 0 : i32
    %9 = arith.cmpi eq, %arg1, %c0_i32_8 : i32
    %10 = arith.extui %9 : i1 to i32
    %c0_i32_9 = arith.constant 0 : i32
    %11 = arith.cmpi ne, %10, %c0_i32_9 : i32
    scf.if %11 {
      %c0_10 = arith.constant 0 : index
      %c0_11 = arith.constant 0 : index
      %12 = vector.load %arg8[%c0_10, %c0_11] : memref<8x128xf32, #tpu.memory_space<vmem>>, vector<8x128xf32>
      %c0_12 = arith.constant 0 : index
      %c0_13 = arith.constant 0 : index
      %13 = vector.load %arg6[%c0_12, %c0_13] : memref<8x128xf32, #tpu.memory_space<vmem>>, vector<8x128xf32>
      tpu.vector_store %arg6[%c0_12, %c0_13], %12 {strides = array<i32>} : memref<8x128xf32, #tpu.memory_space<vmem>>, vector<8x128xf32>,
      %c0_14 = arith.constant 0 : index
      %c0_15 = arith.constant 0 : index
      %14 = vector.load %arg4[%c0_14, %c0_15] : memref<8x128xf32, #tpu.memory_space<vmem>>, vector<8x128xf32>
      %15 = arith.addf %14, %12 : vector<8x128xf32>
      %c0_16 = arith.constant 0 : index
      %c0_17 = arith.constant 0 : index
      %16 = vector.load %arg5[%c0_16, %c0_17] : memref<1x128xf32, #tpu.memory_space<vmem>>, vector<1x128xf32>
      %17 = vector.broadcast %16 : vector<1x128xf32> to vector<8x128xf32>
      %18 = arith.addf %15, %17 : vector<8x128xf32>
      %cst_18 = arith.constant 0.000000e+00 : f32
      %19 = vector.broadcast %cst_18 : f32 to vector<8x128xf32>
      %20 = arith.maximumf %18, %19 : vector<8x128xf32>
      %c0_19 = arith.constant 0 : index
      %c0_20 = arith.constant 0 : index
      %21 = vector.load %arg7[%c0_19, %c0_20] : memref<8x128xf32, #tpu.memory_space<vmem>>, vector<8x128xf32>
      tpu.vector_store %arg7[%c0_19, %c0_20], %20 {strides = array<i32>} : memref<8x128xf32, #tpu.memory_space<vmem>>, vector<8x128xf32>,
    } else {
    }
    return
  }
  func.func @transform_0(%arg0: i32, %arg1: i32) -> (i32, i32) {
    %c0_i32 = arith.constant 0 : i32
    return %arg0, %arg1 : i32, i32
  }
  func.func @transform_1(%arg0: i32, %arg1: i32) -> (i32, i32) {
    %c0_i32 = arith.constant 0 : i32
    %c0_i32_0 = arith.constant 0 : i32
    return %arg1, %c0_i32 : i32, i32
  }
  func.func @transform_2(%arg0: i32, %arg1: i32) -> (i32, i32) {
    %c0_i32 = arith.constant 0 : i32
    %c0_i32_0 = arith.constant 0 : i32
    return %arg0, %c0_i32 : i32, i32
  }
  func.func @transform_3(%arg0: i32, %arg1: i32) -> (i32, i32) {
    %c0_i32 = arith.constant 0 : i32
    %c0_i32_0 = arith.constant 0 : i32
    %c0_i32_1 = arith.constant 0 : i32
    return %c0_i32, %c0_i32_0 : i32, i32
  }
  func.func @transform_4(%arg0: i32, %arg1: i32) -> (i32, i32) {
    %c0_i32 = arith.constant 0 : i32
    %c0_i32_0 = arith.constant 0 : i32
    return %arg0, %c0_i32 : i32, i32
  }
  func.func @transform_5(%arg0: i32, %arg1: i32) -> (i32, i32) {
    %c0_i32 = arith.constant 0 : i32
    %c0_i32_0 = arith.constant 0 : i32
    return %arg0, %c0_i32 : i32, i32
  }
}

</mosaic_0001>

<llo_original>
// kernel: conv_layer_forward.3
$region0: #{conv_layer_forward.3}
  #allocation0 [shape = 'u32[]', space=smem, size = 0x4, offset = 0x4, fixed_abs, tag = 'smem constant byte address 0x4 - core index']
  #allocation1 [shape = 'u32[72,128]{1,0:T(1,128)}', space=vmem, size = 0x9000, scoped, tag = 'internal scratch']
  %s0 = inlined_call_operand.vmem [shape: f32[8,32], index: 0, kind: input, shape index: {}]
  %s1 = inlined_call_operand.vmem [shape: f32[32,128], index: 1, kind: input, shape index: {}]
  %s2 = inlined_call_operand.vmem [shape: f32[8,128], index: 2, kind: output, shape index: {0}]
  %s3 = inlined_call_operand.vmem [shape: f32[8,128], index: 3, kind: output, shape index: {1}]
  %4 = xla_tuple %s2, %s3
  %s5 = sld [smem:[#allocation0]]
  $region26: #{conv_layer_forward.3} parent=0
    _
  %s7 = ssub.s32 1, %s5
  %s8 = scalar_select 0, %s7, %s5
  // Predicated region
  $region2: #{conv_layer_forward.3} parent=0 // pred_check
    _
  $region3: #{conv_layer_forward.3} parent=0 // pred_check_branch
    %10 = sbr.rel (0) target = $region5
  $region4: #{conv_layer_forward.3} parent=0 // pred_region
    _
  $region5: #{conv_layer_forward.3} parent=0 // pred_fallthru
    _
  // Predicated region
  $region6: #{conv_layer_forward.3} parent=0 // pred_check
    _
  $region7: #{conv_layer_forward.3} parent=0 // pred_check_branch
    %12 = sbr.rel (0) target = $region9
  $region8: #{conv_layer_forward.3} parent=0 // pred_region
    _
  $region9: #{conv_layer_forward.3} parent=0 // pred_fallthru
    _
  %v13 = vld [vmem:[%s0] sm:$0xff]
  %v14 = vld [vmem:[%s1] sm:$0xff]
  %v15 = vld [vmem:[%s1 + $0x8] sm:$0xff]
  %v16 = vld [vmem:[%s1 + $0x10] sm:$0xff]
  %v17 = vld [vmem:[%s1 + $0x18] sm:$0xff]
  %vm18 = vcmask 261120
  %v20 = vsel %vm18, %v13, 0
  %22 = vmatpush.msra.mxu0 0.0
  %23 = vmatpush.msra.mxu0 0.0
  %24 = vmatpush.msra.mxu0 0.0
  %25 = vmatpush.msra.mxu0 0.0
  %26 = vmatpush.msra.mxu0 0.0
  %27 = vmatpush.msra.mxu0 0.0
  %28 = vmatpush.msra.mxu0 0.0
  %29 = vmatpush.msra.mxu0 0.0
  %30 = vmatpush.msra.mxu0 0.0
  %31 = vmatpush.msra.mxu0 0.0
  %32 = vmatpush.msra.mxu0 0.0
  %33 = vmatpush.msra.mxu0 0.0
  %34 = vmatpush.msra.mxu0 %v17
  %35 = vmatpush.msra.mxu0 %v16
  %36 = vmatpush.msra.mxu0 %v15
  %37 = vmatpush.msra.mxu0 %v14
  %38 = vmatmul.f32.gmra.mxu0 %v20
  %v39 = vpop.f32.mrf.mxu0
  %v40 = vadd.f32 0.0, %v39
  %41 = vdwg.mxu0
  %42 = vst [vmem:[%s2] sm:$0xff] %v40
  %43 = vst [vmem:[%s3] sm:$0xff] %v40
  // Predicated region
  $region10: #{conv_layer_forward.3} parent=0 // pred_check
    _
  $region11: #{conv_layer_forward.3} parent=0 // pred_check_branch
    %45 = sbr.rel (0) target = $region13
  $region12: #{conv_layer_forward.3} parent=0 // pred_region
    _
  $region13: #{conv_layer_forward.3} parent=0 // pred_fallthru
    _
  // Predicated region
  $region14: #{conv_layer_forward.3} parent=0 // pred_check
    _
  $region15: #{conv_layer_forward.3} parent=0 // pred_check_branch
    %47 = sbr.rel (0) target = $region17
  $region16: #{conv_layer_forward.3} parent=0 // pred_region
    _
  $region17: #{conv_layer_forward.3} parent=0 // pred_fallthru
    _
  // Predicated region
  $region18: #{conv_layer_forward.3} parent=0 // pred_check
    _
  $region19: #{conv_layer_forward.3} parent=0 // pred_check_branch
    %49 = sbr.rel (0) target = $region21
  $region20: #{conv_layer_forward.3} parent=0 // pred_region
    _
  $region21: #{conv_layer_forward.3} parent=0 // pred_fallthru
    _
  // Predicated region
  $region22: #{conv_layer_forward.3} parent=0 // pred_check
    _
  $region23: #{conv_layer_forward.3} parent=0 // pred_check_branch
    %51 = sbr.rel (0) target = $region25
  $region24: #{conv_layer_forward.3} parent=0 // pred_region
    _
  $region25: #{conv_layer_forward.3} parent=0 // pred_fallthru
    _

// kernel: conv_layer_forward.4
$region0: #{conv_layer_forward.4}
  #allocation0 [shape = 'u32[]', space=smem, size = 0x4, offset = 0x4, fixed_abs, tag = 'smem constant byte address 0x4 - core index']
  #allocation1 [shape = 'u32[72,128]{1,0:T(1,128)}', space=vmem, size = 0x9000, scoped, tag = 'internal scratch']
  #allocation2 [shape = 'f32[8,128]{1,0:T(8,128)}', space=vmem, size = 0x1000, scoped, tag = 'scratch operand']
  %s0 = inlined_call_operand.vmem [shape: f32[8,8], index: 0, kind: input, shape index: {}]
  %s1 = inlined_call_operand.vmem [shape: f32[8,128], index: 1, kind: input, shape index: {}]
  %s2 = inlined_call_operand.vmem [shape: f32[8,128], index: 2, kind: input, shape index: {}]
  %s3 = inlined_call_operand.vmem [shape: f32[1,128], index: 3, kind: input, shape index: {}]
  %s4 = inlined_call_operand.vmem [shape: f32[8,128], index: 4, kind: output, shape index: {0}]
  %s5 = inlined_call_operand.vmem [shape: f32[8,128], index: 5, kind: output, shape index: {1}]
  %6 = xla_tuple %s4, %s5
  %s7 = sld [smem:[#allocation0]]
  $region42: #{conv_layer_forward.4} parent=0
    _
  %s9 = ssub.s32 1, %s7
  %s10 = scalar_select 0, %s9, %s7
  // Predicated region
  $region2: #{conv_layer_forward.4} parent=0 // pred_check
    _
  $region3: #{conv_layer_forward.4} parent=0 // pred_check_branch
    %12 = sbr.rel (0) target = $region5
  $region4: #{conv_layer_forward.4} parent=0 // pred_region
    _
  $region5: #{conv_layer_forward.4} parent=0 // pred_fallthru
    _
  // Predicated region
  $region6: #{conv_layer_forward.4} parent=0 // pred_check
    _
  $region7: #{conv_layer_forward.4} parent=0 // pred_check_branch
    %14 = sbr.rel (0) target = $region9
  $region8: #{conv_layer_forward.4} parent=0 // pred_region
    _
  $region9: #{conv_layer_forward.4} parent=0 // pred_fallthru
    _
  // Predicated region
  $region10: #{conv_layer_forward.4} parent=0 // pred_check
    _
  $region11: #{conv_layer_forward.4} parent=0 // pred_check_branch
    %16 = sbr.rel (0) target = $region13
  $region12: #{conv_layer_forward.4} parent=0 // pred_region
    _
  $region13: #{conv_layer_forward.4} parent=0 // pred_fallthru
    _
  // Predicated region
  $region14: #{conv_layer_forward.4} parent=0 // pred_check
    _
  $region15: #{conv_layer_forward.4} parent=0 // pred_check_branch
    %18 = sbr.rel (0) target = $region17
  $region16: #{conv_layer_forward.4} parent=0 // pred_region
    _
  $region17: #{conv_layer_forward.4} parent=0 // pred_fallthru
    _
  %p19 = scmp.eq.s32.totalorder 0, 0
  // Predicated region
  $region18: #{conv_layer_forward.4} parent=0 // pred_check
    %p20 = pneg %p19
  $region19: #{conv_layer_forward.4} parent=0 // pred_check_branch
    %22 = sbr.rel (%p20) target = $region21
  $region20: #{conv_layer_forward.4} parent=0 // pred_region
    %23 = vst [vmem:[#allocation2] sm:$0xff] 0.0
  $region21: #{conv_layer_forward.4} parent=0 // pred_fallthru
    _
  %v24 = vld [vmem:[#allocation2] sm:$0xff]
  %v25 = vld [vmem:[%s0] sm:$0xff]
  %v26 = vld [vmem:[%s1] sm:$0xff]
  %vm27 = vcmask 64512
  %v29 = vsel %vm27, %v25, 0
  %31 = vmatpush.msra.mxu0 0.0
  %32 = vmatpush.msra.mxu0 0.0
  %33 = vmatpush.msra.mxu0 0.0
  %34 = vmatpush.msra.mxu0 0.0
  %35 = vmatpush.msra.mxu0 0.0
  %36 = vmatpush.msra.mxu0 0.0
  %37 = vmatpush.msra.mxu0 0.0
  %38 = vmatpush.msra.mxu0 0.0
  %39 = vmatpush.msra.mxu0 0.0
  %40 = vmatpush.msra.mxu0 0.0
  %41 = vmatpush.msra.mxu0 0.0
  %42 = vmatpush.msra.mxu0 0.0
  %43 = vmatpush.msra.mxu0 0.0
  %44 = vmatpush.msra.mxu0 0.0
  %45 = vmatpush.msra.mxu0 0.0
  %46 = vmatpush.msra.mxu0 %v26
  %47 = vmatmul.f32.gmra.mxu0 %v29
  %v48 = vpop.f32.mrf.mxu0
  %v49 = vadd.f32 0.0, %v48
  %50 = vdwg.mxu0
  %v51 = vadd.f32 %v24, %v49
  %52 = vst [vmem:[#allocation2] sm:$0xff] %v51
  // Predicated region
  $region22: #{conv_layer_forward.4} parent=0 // pred_check
    %p53 = pneg %p19
  $region23: #{conv_layer_forward.4} parent=0 // pred_check_branch
    %55 = sbr.rel (%p53) target = $region25
  $region24: #{conv_layer_forward.4} parent=0 // pred_region
    %v56 = vld [vmem:[#allocation2] sm:$0xff]
    %57 = vst [vmem:[%s4] sm:$0xff] %v56
    %v58 = vld [vmem:[%s2] sm:$0xff]
    %v59 = vadd.f32 %v58, %v56
    %60 = vst [vmem:[%s5] sm:$0xff] %v59
  $region25: #{conv_layer_forward.4} parent=0 // pred_fallthru
    _
  // Predicated region
  $region26: #{conv_layer_forward.4} parent=0 // pred_check
    _
  $region27: #{conv_layer_forward.4} parent=0 // pred_check_branch
    %62 = sbr.rel (0) target = $region29
  $region28: #{conv_layer_forward.4} parent=0 // pred_region
    _
  $region29: #{conv_layer_forward.4} parent=0 // pred_fallthru
    _
  // Predicated region
  $region30: #{conv_layer_forward.4} parent=0 // pred_check
    _
  $region31: #{conv_layer_forward.4} parent=0 // pred_check_branch
    %64 = sbr.rel (0) target = $region33
  $region32: #{conv_layer_forward.4} parent=0 // pred_region
    _
  $region33: #{conv_layer_forward.4} parent=0 // pred_fallthru
    _
  // Predicated region
  $region34: #{conv_layer_forward.4} parent=0 // pred_check
    _
  $region35: #{conv_layer_forward.4} parent=0 // pred_check_branch
    %66 = sbr.rel (0) target = $region37
  $region36: #{conv_layer_forward.4} parent=0 // pred_region
    _
  $region37: #{conv_layer_forward.4} parent=0 // pred_fallthru
    _
  // Predicated region
  $region38: #{conv_layer_forward.4} parent=0 // pred_check
    _
  $region39: #{conv_layer_forward.4} parent=0 // pred_check_branch
    %68 = sbr.rel (0) target = $region41
  $region40: #{conv_layer_forward.4} parent=0 // pred_region
    _
  $region41: #{conv_layer_forward.4} parent=0 // pred_fallthru
    _

// kernel: conv_layer_forward.5
$region0: #{conv_layer_forward.5}
  #allocation0 [shape = 'u32[]', space=smem, size = 0x4, offset = 0x4, fixed_abs, tag = 'smem constant byte address 0x4 - core index']
  #allocation1 [shape = 'u32[72,128]{1,0:T(1,128)}', space=vmem, size = 0x9000, scoped, tag = 'internal scratch']
  #allocation2 [shape = 'f32[8,128]{1,0:T(8,128)}', space=vmem, size = 0x1000, scoped, tag = 'scratch operand']
  %s0 = inlined_call_operand.vmem [shape: f32[8,8], index: 0, kind: input, shape index: {}]
  %s1 = inlined_call_operand.vmem [shape: f32[8,128], index: 1, kind: input, shape index: {}]
  %s2 = inlined_call_operand.vmem [shape: f32[8,128], index: 2, kind: input, shape index: {}]
  %s3 = inlined_call_operand.vmem [shape: f32[1,128], index: 3, kind: input, shape index: {}]
  %s4 = inlined_call_operand.hbm [shape: f32[8,128], index: 4, kind: output, shape index: {0}]
  %s5 = inlined_call_operand.hbm [shape: f32[8,128], index: 5, kind: output, shape index: {1}]
  %6 = xla_tuple %s4, %s5
  %s7 = sld [smem:[#allocation0]]
  $region42: #{conv_layer_forward.5} parent=0
    _
  %s9 = ssub.s32 1, %s7
  %s10 = scalar_select 0, %s9, %s7
  $region1: #{conv_layer_forward.5} parent=0
    #allocation3 [shape = 'u8[4096]{0}', space=vmem, size = 0x1000, scoped, tag = 'output window, operand 0, single buffered']
    #allocation4 [shape = 's32[1]{0}', space=sflag, size = 0x4, scoped, tag = 'scoped memory for conv_layer_forward.5']
    #allocation5 [shape = 'u8[4096]{0}', space=vmem, size = 0x1000, scoped, tag = 'output window, operand 1, single buffered']
    #allocation6 [shape = 's32[1]{0}', space=sflag, size = 0x4, scoped, tag = 'scoped memory for conv_layer_forward.5']
    %11 = vsyncpa [#allocation4], 0
    %12 = vsyncpa [#allocation6], 0
    // Predicated region
    $region2: #{conv_layer_forward.5} parent=1 // pred_check
      _
    $region3: #{conv_layer_forward.5} parent=1 // pred_check_branch
      %14 = sbr.rel (0) target = $region5
    $region4: #{conv_layer_forward.5} parent=1 // pred_region
      _
    $region5: #{conv_layer_forward.5} parent=1 // pred_fallthru
      _
    // Predicated region
    $region6: #{conv_layer_forward.5} parent=1 // pred_check
      _
    $region7: #{conv_layer_forward.5} parent=1 // pred_check_branch
      %16 = sbr.rel (0) target = $region9
    $region8: #{conv_layer_forward.5} parent=1 // pred_region
      _
    $region9: #{conv_layer_forward.5} parent=1 // pred_fallthru
      _
    // Predicated region
    $region10: #{conv_layer_forward.5} parent=1 // pred_check
      _
    $region11: #{conv_layer_forward.5} parent=1 // pred_check_branch
      %18 = sbr.rel (0) target = $region13
    $region12: #{conv_layer_forward.5} parent=1 // pred_region
      _
    $region13: #{conv_layer_forward.5} parent=1 // pred_fallthru
      _
    // Predicated region
    $region14: #{conv_layer_forward.5} parent=1 // pred_check
      _
    $region15: #{conv_layer_forward.5} parent=1 // pred_check_branch
      %20 = sbr.rel (0) target = $region17
    $region16: #{conv_layer_forward.5} parent=1 // pred_region
      _
    $region17: #{conv_layer_forward.5} parent=1 // pred_fallthru
      _
    %p21 = scmp.eq.s32.totalorder 0, 0
    // Predicated region
    $region18: #{conv_layer_forward.5} parent=1 // pred_check
      %p22 = pneg %p21
    $region19: #{conv_layer_forward.5} parent=1 // pred_check_branch
      %24 = sbr.rel (%p22) target = $region21
    $region20: #{conv_layer_forward.5} parent=1 // pred_region
      %25 = vst [vmem:[#allocation2] sm:$0xff] 0.0
    $region21: #{conv_layer_forward.5} parent=1 // pred_fallthru
      _
    %v26 = vld [vmem:[#allocation2] sm:$0xff]
    %v27 = vld [vmem:[%s0] sm:$0xff]
    %v28 = vld [vmem:[%s1] sm:$0xff]
    %vm29 = vcmask 64512
    %v31 = vsel %vm29, %v27, 0
    %33 = vmatpush.msra.mxu0 0.0
    %34 = vmatpush.msra.mxu0 0.0
    %35 = vmatpush.msra.mxu0 0.0
    %36 = vmatpush.msra.mxu0 0.0
    %37 = vmatpush.msra.mxu0 0.0
    %38 = vmatpush.msra.mxu0 0.0
    %39 = vmatpush.msra.mxu0 0.0
    %40 = vmatpush.msra.mxu0 0.0
    %41 = vmatpush.msra.mxu0 0.0
    %42 = vmatpush.msra.mxu0 0.0
    %43 = vmatpush.msra.mxu0 0.0
    %44 = vmatpush.msra.mxu0 0.0
    %45 = vmatpush.msra.mxu0 0.0
    %46 = vmatpush.msra.mxu0 0.0
    %47 = vmatpush.msra.mxu0 0.0
    %48 = vmatpush.msra.mxu0 %v28
    %49 = vmatmul.f32.gmra.mxu0 %v31
    %v50 = vpop.f32.mrf.mxu0
    %v51 = vadd.f32 0.0, %v50
    %52 = vdwg.mxu0
    %v53 = vadd.f32 %v26, %v51
    %54 = vst [vmem:[#allocation2] sm:$0xff] %v53
    // Predicated region
    $region22: #{conv_layer_forward.5} parent=1 // pred_check
      %p55 = pneg %p21
    $region23: #{conv_layer_forward.5} parent=1 // pred_check_branch
      %57 = sbr.rel (%p55) target = $region25
    $region24: #{conv_layer_forward.5} parent=1 // pred_region
      %v58 = vld [vmem:[#allocation2] sm:$0xff]
      %59 = vst [vmem:[#allocation3] sm:$0xff] %v58
      %v60 = vld [vmem:[%s2] sm:$0xff]
      %v61 = vadd.f32 %v60, %v58
      %v62 = vld [vmem:[%s3] sm:$0x1]
      %v64 = vperm.slane %v62, 0
      %v66 = vadd.f32 %v61, %v64
      %v67 = vmax.f32 %v66, 0.0
      %68 = vst [vmem:[#allocation5] sm:$0xff] %v67
    $region25: #{conv_layer_forward.5} parent=1 // pred_fallthru
      _
    // Predicated region
    $region26: #{conv_layer_forward.5} parent=1 // pred_check
      _
    $region27: #{conv_layer_forward.5} parent=1 // pred_check_branch
      %70 = sbr.rel (0) target = $region29
    $region28: #{conv_layer_forward.5} parent=1 // pred_region
      %72 = vsyncadd [#allocation4], 0
      %s74 = sshll.u32 [#allocation3], 4
      %s75 = int_to_ptr.vmem [resolvable:$true] %s74
      %s76 = sshll.u32 %s4, 4
      %s77 = int_to_ptr.hbm [resolvable:$true] %s76
      %79 = dma.vmem_to_hbm [thread:$0]  %s75, 128, %s77, [#allocation4]
    $region29: #{conv_layer_forward.5} parent=1 // pred_fallthru
      _
    // Predicated region
    $region30: #{conv_layer_forward.5} parent=1 // pred_check
      _
    $region31: #{conv_layer_forward.5} parent=1 // pred_check_branch
      %81 = sbr.rel (0) target = $region33
    $region32: #{conv_layer_forward.5} parent=1 // pred_region
      %83 = vsyncadd [#allocation6], 0
      %s85 = sshll.u32 [#allocation5], 4
      %s86 = int_to_ptr.vmem [resolvable:$true] %s85
      %s87 = sshll.u32 %s5, 4
      %s88 = int_to_ptr.hbm [resolvable:$true] %s87
      %90 = dma.vmem_to_hbm [thread:$0]  %s86, 128, %s88, [#allocation6]
    $region33: #{conv_layer_forward.5} parent=1 // pred_fallthru
      _
    // Predicated region
    $region34: #{conv_layer_forward.5} parent=1 // pred_check
      _
    $region35: #{conv_layer_forward.5} parent=1 // pred_check_branch
      %92 = sbr.rel (0) target = $region37
    $region36: #{conv_layer_forward.5} parent=1 // pred_region
      %94 = dma.done [#allocation4], 128
    $region37: #{conv_layer_forward.5} parent=1 // pred_fallthru
      _
    // Predicated region
    $region38: #{conv_layer_forward.5} parent=1 // pred_check
      _
    $region39: #{conv_layer_forward.5} parent=1 // pred_check_branch
      %96 = sbr.rel (0) target = $region41
    $region40: #{conv_layer_forward.5} parent=1 // pred_region
      %98 = dma.done [#allocation6], 128
    $region41: #{conv_layer_forward.5} parent=1 // pred_fallthru
      _
    %99 = vsyncpa [#allocation4], 1
    %100 = vsyncpa [#allocation6], 1

</llo_original>
